<compile_context>
chip_gen: v7x
topology: tpu7x:2x2x1
jax: 0.10.0
libtpu: 0.0.40
codegen_flags: <defaults>
</compile_context>

<pallas_src>
import functools

import jax
import jax.numpy as jnp
from jax import lax
from jax.experimental import pallas as pl
from jax.experimental.pallas import tpu as pltpu

BN_EPS = 1e-5


# -----------------------------------------------------------------------------
# small helpers
# -----------------------------------------------------------------------------
def _pair(v):
    return (v, v) if isinstance(v, int) else tuple(v)


def _round_up(a, b):
    return ((a + b - 1) // b) * b


@functools.lru_cache(maxsize=1)
def _vmem_limit_bytes():
    """Generation-aware scoped-VMEM budget (~48 MiB on v7x, ~96 MiB on v5e/v6e)."""
    cap = None
    try:
        cap = int(getattr(pltpu.get_tpu_info(), "vmem_capacity_bytes", 0)) or None
    except Exception:
        cap = None
    if cap is None:
        cap = 64 * 1024 * 1024                      # conservative (v7x-sized) default
    return max(16 * 1024 * 1024, min(cap * 3 // 4, 96 * 1024 * 1024))


def _pick_tn(coutp, n_parallel_hint):
    """cout tile: multiple of 128; prefer >=2 parallel grid blocks (v7x has 2 TCs)."""
    for t in (512, 256, 128):
        if coutp % t == 0 and (n_parallel_hint * (coutp // t) >= 2 or t == 128):
            return t
    return coutp


def _pick_row_tile(ho, wo, tn, out_isz, budget=4 * 1024 * 1024):
    t = ho
    while t > 1 and t * _round_up(wo, 8) * _round_up(tn, 128) * out_isz > budget:
        t = (t + 1) // 2
    return t


def _fused_fits(hp, wp, cin, kh, kw, tn, t_oh, wo, out_isz, limit):
    """Rough double-buffered VMEM estimate (lane/sublane padded) for the fused path."""
    x_b = hp * _round_up(wp, 8) * _round_up(cin, 128) * 2         # bf16 sample
    w_b = kh * kw * _round_up(cin, 8) * _round_up(tn, 128) * 2    # bf16 weights
    o_b = t_oh * _round_up(wo, 8) * _round_up(tn, 128) * out_isz  # output tile
    b_b = 8 * _round_up(tn, 128) * 4                              # bias row
    return 2 * (x_b + w_b + b_b) + 2 * o_b <= int(limit * 0.6)


# -----------------------------------------------------------------------------
# Fused implicit-im2col conv + bias + ReLU kernel (main path)
# -----------------------------------------------------------------------------
def _conv_tap_kernel(x_ref, w_ref, b_ref, o_ref, *,
                     kh, kw, sh, sw, dh, dw, ho, t_oh, relu):
    """One sample / one cout tile / one output-row tile.

    x_ref: (Hp, Wp, Cin)    bf16 -- padded sample, resident across cout/row tiles
    w_ref: (kh*kw, Cin, TN) bf16 -- BN-folded weight columns of this cout tile
    b_ref: (1, TN)          f32  -- folded bias (conv bias + BN shift)
    o_ref: (T_OH, WO, TN)        -- output rows of this tile
    """
    wo = o_ref.shape[1]
    tn = o_ref.shape[2]
    oh0 = pl.program_id(2) * t_oh
    rows = jnp.minimum(t_oh, ho - oh0)                       # partial last row tile
    bias_tile = jnp.broadcast_to(b_ref[...].astype(jnp.float32), (wo, tn))

    def row_body(i, carry):
        oh = oh0 + i
        acc = bias_tile                                      # f32, bias-initialised
        for dy in range(kh):
            row = oh * sh + dy * dh
            for dx in range(kw):
                col = (pl.ds(dx * dw, wo) if sw == 1
                       else pl.ds(dx * dw, wo, stride=sw))
                patch = x_ref[row, col, :]                   # (WO, Cin) bf16
                acc = acc + jnp.dot(patch, w_ref[dy * kw + dx],
                                    preferred_element_type=jnp.float32)
        if relu:
            acc = jnp.maximum(acc, 0.0)
        o_ref[i] = acc.astype(o_ref.dtype)
        return carry

    lax.fori_loop(0, rows, row_body, 0)


# -----------------------------------------------------------------------------
# Fallback: bf16 im2col + single fused matmul (weights resident across M tiles)
# -----------------------------------------------------------------------------
def _mm_bias_act_kernel(x_ref, w_ref, b_ref, o_ref, *, relu):
    y = jnp.dot(x_ref[...], w_ref[...], preferred_element_type=jnp.float32) + b_ref[...]
    if relu:
        y = jnp.maximum(y, 0.0)
    o_ref[...] = y.astype(o_ref.dtype)


def _pick_tm(m, k, tn, out_isz, limit):
    budget = int(limit * 0.6)
    w_b = _round_up(k, 8) * _round_up(tn, 128) * 2
    tm = 8
    for cand in (2048, 1024, 512, 256, 128, 64, 32, 16, 8):
        x_b = cand * _round_up(k, 128) * 2
        o_b = cand * _round_up(tn, 128) * out_isz
        if 2 * (x_b + w_b) + 2 * o_b <= budget:
            tm = cand
            break
    return m if tm >= m else tm


def _matmul_bias_act(x2d, w2d, b2, *, relu, out_dtype, vmem_limit):
    """out = act(x2d @ w2d + b2).  x2d (M,K) bf16, w2d (K,N) bf16 (N multiple of 128)."""
    m, k = x2d.shape
    _, n = w2d.shape
    tn = _pick_tn(n, 8)
    tm = _pick_tm(m, k, tn, jnp.dtype(out_dtype).itemsize, vmem_limit)
    # M tiles innermost -> the (K,TN) weight block index is constant across them (resident).
    grid = (n // tn, pl.cdiv(m, tm))
    return pl.pallas_call(
        functools.partial(_mm_bias_act_kernel, relu=relu),
        out_shape=jax.ShapeDtypeStruct((m, n), out_dtype),
        grid_spec=pltpu.PrefetchScalarGridSpec(
            num_scalar_prefetch=0,
            grid=grid,
            in_specs=[
                pl.BlockSpec((tm, k), lambda j, i: (i, 0)),
                pl.BlockSpec((k, tn), lambda j, i: (0, j)),
                pl.BlockSpec((1, tn), lambda j, i: (0, j)),
            ],
            out_specs=pl.BlockSpec((tm, tn), lambda j, i: (i, j)),
        ),
        compiler_params=pltpu.CompilerParams(
            dimension_semantics=("parallel", "arbitrary"),
            vmem_limit_bytes=vmem_limit),
    )(x2d, w2d, b2)


def _im2col(x, ksize, stride, padding, dilation):
    """bf16 patch matrix (only used on the fallback path)."""
    kh, kw = ksize
    sh, sw = stride
    ph, pw = padding
    dh, dw = dilation
    n, h, w, c = x.shape
    ho = (h + 2 * ph - dh * (kh - 1) - 1) // sh + 1
    wo = (w + 2 * pw - dw * (kw - 1) - 1) // sw + 1
    xp = jnp.pad(x, ((0, 0), (ph, ph), (pw, pw), (0, 0))) if (ph or pw) else x
    cols = []
    for dy in range(kh):
        for dx in range(kw):
            y0, x0 = dy * dh, dx * dw
            cols.append(xp[:, y0:y0 + sh * ho:sh, x0:x0 + sw * wo:sw, :])
    patches = jnp.concatenate(cols, axis=-1)                  # (n, ho, wo, kh*kw*c)
    return patches.reshape(n * ho * wo, kh * kw * c)


# -----------------------------------------------------------------------------
# Conv dispatcher (fused path when it fits VMEM, else bf16-im2col fallback)
# -----------------------------------------------------------------------------
def _conv2d_bias_act(x, w, b, *, stride, padding, dilation, relu, out_dtype,
                     force_im2col=False):
    """act(conv2d(x, w) + b).  x: (N,H,W,Cin) bf16; w: (kh,kw,Cin,Coutp) bf16 with Coutp a
    multiple of 128; b: (Coutp,) f32.  Returns (N, HO, WO, Coutp) in out_dtype."""
    n, h, wid, cin = x.shape
    kh, kw, _, coutp = w.shape
    sh, sw = stride
    ph, pw = padding
    dh, dw = dilation
    ho = (h + 2 * ph - dh * (kh - 1) - 1) // sh + 1
    wo = (wid + 2 * pw - dw * (kw - 1) - 1) // sw + 1
    limit = _vmem_limit_bytes()
    out_isz = jnp.dtype(out_dtype).itemsize
    b2 = b.reshape(1, coutp).astype(jnp.float32)

    if not force_im2col:
        hp, wp = h + 2 * ph, wid + 2 * pw
        tn = _pick_tn(coutp, n)
        t_oh = _pick_row_tile(ho, wo, tn, out_isz)
        if _fused_fits(hp, wp, cin, kh, kw, tn, t_oh, wo, out_isz, limit):
            xp = jnp.pad(x, ((0, 0), (ph, ph), (pw, pw), (0, 0))) if (ph or pw) else x
            w3 = w.reshape(kh * kw, cin, coutp)
            grid = (n, coutp // tn, pl.cdiv(ho, t_oh))
            return pl.pallas_call(
                functools.partial(_conv_tap_kernel, kh=kh, kw=kw, sh=sh, sw=sw,
                                  dh=dh, dw=dw, ho=ho, t_oh=t_oh, relu=relu),
                out_shape=jax.ShapeDtypeStruct((n, ho, wo, coutp), out_dtype),
                grid_spec=pltpu.PrefetchScalarGridSpec(
                    num_scalar_prefetch=0,
                    grid=grid,
                    in_specs=[
                        # full padded sample; constant across cout / row tiles (resident)
                        pl.BlockSpec((None, hp, wp, cin),
                                     lambda bi, j, r: (bi, 0, 0, 0)),
                        pl.BlockSpec((kh * kw, cin, tn),
                                     lambda bi, j, r: (0, 0, j)),
                        pl.BlockSpec((1, tn), lambda bi, j, r: (0, j)),
                    ],
                    out_specs=pl.BlockSpec((None, t_oh, wo, tn),
                                           lambda bi, j, r: (bi, r, 0, j)),
                ),
                compiler_params=pltpu.CompilerParams(
                    dimension_semantics=("parallel", "parallel", "arbitrary"),
                    vmem_limit_bytes=limit),
            )(xp, w3, b2)

    # Fallback for shapes whose per-sample footprint exceeds the VMEM budget.
    x2d = _im2col(x, (kh, kw), stride, padding, dilation)
    y2d = _matmul_bias_act(x2d, w.reshape(kh * kw * cin, coutp), b2,
                           relu=relu, out_dtype=out_dtype, vmem_limit=limit)
    return y2d.reshape(n, ho, wo, coutp)


# -----------------------------------------------------------------------------
# BasicConv: parameter init, BN fold, forward
# -----------------------------------------------------------------------------
def init_basic_conv(key, in_planes, out_planes, kernel_size, bias=False, bn=True):
    kh, kw = _pair(kernel_size)
    k_w, k_b, k_g, k_beta = jax.random.split(key, 4)
    fan_in = kh * kw * in_planes
    p = {"w": jax.random.normal(k_w, (kh, kw, in_planes, out_planes), jnp.float32)
              * jnp.sqrt(2.0 / fan_in)}
    if bias:
        p["conv_bias"] = 0.1 * jax.random.normal(k_b, (out_planes,), jnp.float32)
    if bn:
        p["gamma"] = 1.0 + 0.1 * jax.random.normal(k_g, (out_planes,), jnp.float32)
        p["beta"] = 0.1 * jax.random.normal(k_beta, (out_planes,), jnp.float32)
        p["running_mean"] = jnp.zeros((out_planes,), jnp.float32)
        p["running_var"] = jnp.ones((out_planes,), jnp.float32)
    return p


def _folded_w_b(params, *, bn, eps=BN_EPS):
    """Fold eval-mode BatchNorm + conv bias into (weight, bias)."""
    w = params["w"].astype(jnp.float32)                       # (kh, kw, cin, cout)
    cout = w.shape[-1]
    b = params.get("conv_bias")
    b = jnp.zeros((cout,), jnp.float32) if b is None else b.astype(jnp.float32)
    if bn:
        scale = params["gamma"] / jnp.sqrt(params["running_var"] + eps)
        shift = params["beta"] - params["running_mean"] * scale
        w = w * scale
        b = b * scale + shift
    return w, b


def _basic_conv_nhwc(x_nhwc, params, *, stride, padding, dilation, groups,
                     relu, bn, out_dtype, force_im2col):
    if groups != 1:
        # TODO(synk): grouped convolution (groups > 1) is not implemented in this port.
        raise NotImplementedError("groups > 1 not supported")
    w, b = _folded_w_b(params, bn=bn)
    kh, kw, cin, cout = w.shape
    coutp = _round_up(cout, 128)                              # lane-dense output stores
    if coutp != cout:
        w = jnp.pad(w, ((0, 0), (0, 0), (0, 0), (0, coutp - cout)))
        b = jnp.pad(b, (0, coutp - cout))
    y = _conv2d_bias_act(x_nhwc.astype(jnp.bfloat16), w.astype(jnp.bfloat16), b,
                         stride=_pair(stride), padding=_pair(padding),
                         dilation=_pair(dilation), relu=relu,
                         out_dtype=out_dtype, force_im2col=force_im2col)
    return y, cout


def basic_conv_apply(x_nchw, params, *, stride=1, padding=0, dilation=1, groups=1,
                     relu=True, bn=True, out_dtype=jnp.float32, force_im2col=False):
    """PyTorch-layout entry point: NCHW in -> NCHW out (f32 by default)."""
    x_nhwc = jnp.transpose(x_nchw, (0, 2, 3, 1)).astype(jnp.bfloat16)
    y, cout = _basic_conv_nhwc(x_nhwc, params, stride=stride, padding=padding,
                               dilation=dilation, groups=groups, relu=relu, bn=bn,
                               out_dtype=out_dtype, force_im2col=force_im2col)
    # channel-pad strip fuses with the layout transpose (single XLA pass)
    return jnp.transpose(y[..., :cout], (0, 3, 1, 2))


def basic_conv_apply_nhwc(x_nhwc, params, *, stride=1, padding=0, dilation=1, groups=1,
                          relu=True, bn=True, out_dtype=jnp.bfloat16, force_im2col=False):
    """NHWC / bf16 entry point for chaining BasicConv layers without layout transposes."""
    y, cout = _basic_conv_nhwc(x_nhwc, params, stride=stride, padding=padding,
                               dilation=dilation, groups=groups, relu=relu, bn=bn,
                               out_dtype=out_dtype, force_im2col=force_im2col)
    return y[..., :cout]


def basic_conv_reference(x_nchw, params, *, stride=1, padding=0, dilation=1,
                         relu=True, bn=True):
    """Plain-JAX reference on the SAME bf16-cast operands (f32 accumulation)."""
    w, b = _folded_w_b(params, bn=bn)
    sh, sw = _pair(stride)
    ph, pw = _pair(padding)
    dh, dw = _pair(dilation)
    x = jnp.transpose(x_nchw, (0, 2, 3, 1))
    y = lax.conv_general_dilated(
        x.astype(jnp.bfloat16), w.astype(jnp.bfloat16),
        window_strides=(sh, sw), padding=((ph, ph), (pw, pw)),
        rhs_dilation=(dh, dw), dimension_numbers=("NHWC", "HWIO", "NHWC"),
        preferred_element_type=jnp.float32)
    y = y + b.reshape(1, 1, 1, -1)
    if relu:
        y = jnp.maximum(y, 0.0)
    return jnp.transpose(y, (0, 3, 1, 2))


if __name__ == "__main__":
    key = jax.random.PRNGKey(0)

    # Configs exercising: stem-like small cin/cout (lane-padded cout), stride-2 with a
    # strided in-kernel tap read, 1x1 conv with bias / no BN / no ReLU, and dilation=2.
    configs = [
        dict(cin=4,   cout=32,  k=3, stride=1, padding=1, dilation=1, relu=True,  bn=True,  bias=False, hw=16, batch=2),
        dict(cin=128, cout=256, k=3, stride=2, padding=1, dilation=1, relu=True,  bn=True,  bias=False, hw=16, batch=2),
        dict(cin=32,  cout=64,  k=1, stride=1, padding=0, dilation=1, relu=False, bn=False, bias=True,  hw=8,  batch=2),
        dict(cin=16,  cout=32,  k=3, stride=1, padding=2, dilation=2, relu=True,  bn=True,  bias=False, hw=16, batch=2),
    ]

    for cfg in configs:
        key, k_p, k_x = jax.random.split(key, 3)
        params = init_basic_conv(k_p, cfg["cin"], cfg["cout"], cfg["k"],
                                 bias=cfg["bias"], bn=cfg["bn"])
        x = jax.random.normal(k_x, (cfg["batch"], cfg["cin"], cfg["hw"], cfg["hw"]),
                              jnp.float32)

        ref = basic_conv_reference(x, params, stride=cfg["stride"], padding=cfg["padding"],
                                   dilation=cfg["dilation"], relu=cfg["relu"], bn=cfg["bn"])
        ho = (cfg["hw"] + 2 * cfg["padding"]
              - cfg["dilation"] * (cfg["k"] - 1) - 1) // cfg["stride"] + 1

        # Exercise both the fused implicit-im2col path and the im2col fallback path.
        for force_im2col in (False, True):
            fwd = jax.jit(functools.partial(
                basic_conv_apply, stride=cfg["stride"], padding=cfg["padding"],
                dilation=cfg["dilation"], groups=1, relu=cfg["relu"], bn=cfg["bn"],
                force_im2col=force_im2col))
            out = jax.block_until_ready(fwd(x, params))

            assert out.shape == (cfg["batch"], cfg["cout"], ho, ho), out.shape
            assert bool(jnp.isfinite(out).all())
            err = float(jnp.max(jnp.abs(out - ref)))
            assert bool(jnp.allclose(out, ref, atol=5e-2, rtol=5e-2)), (cfg, force_im2col, err)

    print("KERNEL_OK")
</pallas_src>

<mosaic_0001>
module attributes {stable_mosaic.version = 11 : i64} {
  func.func @_conv_tap_kernel(%arg0: i32, %arg1: i32, %arg2: i32, %arg3: memref<1x18x18x4xbf16, #tpu.memory_space<vmem>>, %arg4: memref<9x4x128xbf16, #tpu.memory_space<vmem>>, %arg5: memref<1x128xf32, #tpu.memory_space<vmem>>, %arg6: memref<1x16x16x128xf32, #tpu.memory_space<vmem>>) attributes {dimension_semantics = [#tpu.dimension_semantics<parallel>, #tpu.dimension_semantics<parallel>, #tpu.dimension_semantics<arbitrary>], iteration_bounds = array<i64: 2, 1, 1>, scalar_prefetch = 0 : i64, scratch_operands = 0 : i64, tpu.core_type = #tpu.core_type<tc>, window_params = [{transform_indices = @transform_0, window_bounds = array<i64: 1, 18, 18, 4>}, {transform_indices = @transform_1, window_bounds = array<i64: 9, 4, 128>}, {transform_indices = @transform_2, window_bounds = array<i64: 1, 128>}, {transform_indices = @transform_3, window_bounds = array<i64: 1, 16, 16, 128>}]} {
    %c16_i32 = arith.constant 16 : i32
    %0 = arith.muli %arg2, %c16_i32 : i32
    %c16_i32_0 = arith.constant 16 : i32
    %1 = arith.subi %c16_i32_0, %0 : i32
    %c16_i32_1 = arith.constant 16 : i32
    %2 = arith.minsi %c16_i32_1, %1 : i32
    %c0 = arith.constant 0 : index
    %c0_2 = arith.constant 0 : index
    %3 = vector.load %arg5[%c0, %c0_2] : memref<1x128xf32, #tpu.memory_space<vmem>>, vector<1x128xf32>
    %4 = vector.shape_cast %3 : vector<1x128xf32> to vector<1x128xf32>
    %5 = vector.broadcast %4 : vector<1x128xf32> to vector<16x128xf32>
    %c0_i32 = arith.constant 0 : i32
    %c0_i32_3 = arith.constant 0 : i32
    %6 = arith.subi %2, %c0_i32_3 : i32
    %7 = arith.addi %c0_i32_3, %6 : i32
    %c1_i32 = arith.constant 1 : i32
    scf.for %arg7 = %c0_i32_3 to %7 step %c1_i32  : i32 {
      %8 = arith.addi %0, %arg7 : i32
      %c1_i32_4 = arith.constant 1 : i32
      %9 = arith.muli %8, %c1_i32_4 : i32
      %c0_i32_5 = arith.constant 0 : i32
      %10 = arith.addi %9, %c0_i32_5 : i32
      %c0_6 = arith.constant 0 : index
      %11 = arith.index_cast %10 : i32 to index
      %c0_7 = arith.constant 0 : index
      %c0_8 = arith.constant 0 : index
      %12 = vector.load %arg3[%c0_6, %11, %c0_7, %c0_8] : memref<1x18x18x4xbf16, #tpu.memory_space<vmem>>, vector<1x1x16x4xbf16>
      %13 = vector.shape_cast %12 : vector<1x1x16x4xbf16> to vector<16x4xbf16>
      %c0_9 = arith.constant 0 : index
      %c0_10 = arith.constant 0 : index
      %c0_11 = arith.constant 0 : index
      %14 = vector.load %arg4[%c0_9, %c0_10, %c0_11] : memref<9x4x128xbf16, #tpu.memory_space<vmem>>, vector<1x4x128xbf16>
      %15 = vector.shape_cast %14 : vector<1x4x128xbf16> to vector<4x128xbf16>
      %cst = arith.constant dense<0.000000e+00> : vector<16x128xf32>
      %16 = tpu.matmul %13, %15, %cst {dimension_numbers = #tpu.dot_dimension_numbers<[1], [0], [0], [1], [0, 0, 1, 1], [], []>} : vector<16x4xbf16>, vector<4x128xbf16>, vector<16x128xf32> -> vector<16x128xf32>
      %17 = arith.addf %5, %16 : vector<16x128xf32>
      %c0_12 = arith.constant 0 : index
      %18 = arith.index_cast %10 : i32 to index
      %c1 = arith.constant 1 : index
      %c0_13 = arith.constant 0 : index
      %19 = vector.load %arg3[%c0_12, %18, %c1, %c0_13] : memref<1x18x18x4xbf16, #tpu.memory_space<vmem>>, vector<1x1x16x4xbf16>
      %20 = vector.shape_cast %19 : vector<1x1x16x4xbf16> to vector<16x4xbf16>
      %c1_14 = arith.constant 1 : index
      %c0_15 = arith.constant 0 : index
      %c0_16 = arith.constant 0 : index
      %21 = vector.load %arg4[%c1_14, %c0_15, %c0_16] : memref<9x4x128xbf16, #tpu.memory_space<vmem>>, vector<1x4x128xbf16>
      %22 = vector.shape_cast %21 : vector<1x4x128xbf16> to vector<4x128xbf16>
      %cst_17 = arith.constant dense<0.000000e+00> : vector<16x128xf32>
      %23 = tpu.matmul %20, %22, %cst_17 {dimension_numbers = #tpu.dot_dimension_numbers<[1], [0], [0], [1], [0, 0, 1, 1], [], []>} : vector<16x4xbf16>, vector<4x128xbf16>, vector<16x128xf32> -> vector<16x128xf32>
      %24 = arith.addf %17, %23 : vector<16x128xf32>
      %c0_18 = arith.constant 0 : index
      %25 = arith.index_cast %10 : i32 to index
      %c2 = arith.constant 2 : index
      %c0_19 = arith.constant 0 : index
      %26 = vector.load %arg3[%c0_18, %25, %c2, %c0_19] : memref<1x18x18x4xbf16, #tpu.memory_space<vmem>>, vector<1x1x16x4xbf16>
      %27 = vector.shape_cast %26 : vector<1x1x16x4xbf16> to vector<16x4xbf16>
      %c2_20 = arith.constant 2 : index
      %c0_21 = arith.constant 0 : index
      %c0_22 = arith.constant 0 : index
      %28 = vector.load %arg4[%c2_20, %c0_21, %c0_22] : memref<9x4x128xbf16, #tpu.memory_space<vmem>>, vector<1x4x128xbf16>
      %29 = vector.shape_cast %28 : vector<1x4x128xbf16> to vector<4x128xbf16>
      %cst_23 = arith.constant dense<0.000000e+00> : vector<16x128xf32>
      %30 = tpu.matmul %27, %29, %cst_23 {dimension_numbers = #tpu.dot_dimension_numbers<[1], [0], [0], [1], [0, 0, 1, 1], [], []>} : vector<16x4xbf16>, vector<4x128xbf16>, vector<16x128xf32> -> vector<16x128xf32>
      %31 = arith.addf %24, %30 : vector<16x128xf32>
      %c1_i32_24 = arith.constant 1 : i32
      %32 = arith.muli %8, %c1_i32_24 : i32
      %c1_i32_25 = arith.constant 1 : i32
      %33 = arith.addi %32, %c1_i32_25 : i32
      %c0_26 = arith.constant 0 : index
      %34 = arith.index_cast %33 : i32 to index
      %c0_27 = arith.constant 0 : index
      %c0_28 = arith.constant 0 : index
      %35 = vector.load %arg3[%c0_26, %34, %c0_27, %c0_28] : memref<1x18x18x4xbf16, #tpu.memory_space<vmem>>, vector<1x1x16x4xbf16>
      %36 = vector.shape_cast %35 : vector<1x1x16x4xbf16> to vector<16x4xbf16>
      %c3 = arith.constant 3 : index
      %c0_29 = arith.constant 0 : index
      %c0_30 = arith.constant 0 : index
      %37 = vector.load %arg4[%c3, %c0_29, %c0_30] : memref<9x4x128xbf16, #tpu.memory_space<vmem>>, vector<1x4x128xbf16>
      %38 = vector.shape_cast %37 : vector<1x4x128xbf16> to vector<4x128xbf16>
      %cst_31 = arith.constant dense<0.000000e+00> : vector<16x128xf32>
      %39 = tpu.matmul %36, %38, %cst_31 {dimension_numbers = #tpu.dot_dimension_numbers<[1], [0], [0], [1], [0, 0, 1, 1], [], []>} : vector<16x4xbf16>, vector<4x128xbf16>, vector<16x128xf32> -> vector<16x128xf32>
      %40 = arith.addf %31, %39 : vector<16x128xf32>
      %c0_32 = arith.constant 0 : index
      %41 = arith.index_cast %33 : i32 to index
      %c1_33 = arith.constant 1 : index
      %c0_34 = arith.constant 0 : index
      %42 = vector.load %arg3[%c0_32, %41, %c1_33, %c0_34] : memref<1x18x18x4xbf16, #tpu.memory_space<vmem>>, vector<1x1x16x4xbf16>
      %43 = vector.shape_cast %42 : vector<1x1x16x4xbf16> to vector<16x4xbf16>
      %c4 = arith.constant 4 : index
      %c0_35 = arith.constant 0 : index
      %c0_36 = arith.constant 0 : index
      %44 = vector.load %arg4[%c4, %c0_35, %c0_36] : memref<9x4x128xbf16, #tpu.memory_space<vmem>>, vector<1x4x128xbf16>
      %45 = vector.shape_cast %44 : vector<1x4x128xbf16> to vector<4x128xbf16>
      %cst_37 = arith.constant dense<0.000000e+00> : vector<16x128xf32>
      %46 = tpu.matmul %43, %45, %cst_37 {dimension_numbers = #tpu.dot_dimension_numbers<[1], [0], [0], [1], [0, 0, 1, 1], [], []>} : vector<16x4xbf16>, vector<4x128xbf16>, vector<16x128xf32> -> vector<16x128xf32>
      %47 = arith.addf %40, %46 : vector<16x128xf32>
      %c0_38 = arith.constant 0 : index
      %48 = arith.index_cast %33 : i32 to index
      %c2_39 = arith.constant 2 : index
      %c0_40 = arith.constant 0 : index
      %49 = vector.load %arg3[%c0_38, %48, %c2_39, %c0_40] : memref<1x18x18x4xbf16, #tpu.memory_space<vmem>>, vector<1x1x16x4xbf16>
      %50 = vector.shape_cast %49 : vector<1x1x16x4xbf16> to vector<16x4xbf16>
      %c5 = arith.constant 5 : index
      %c0_41 = arith.constant 0 : index
      %c0_42 = arith.constant 0 : index
      %51 = vector.load %arg4[%c5, %c0_41, %c0_42] : memref<9x4x128xbf16, #tpu.memory_space<vmem>>, vector<1x4x128xbf16>
      %52 = vector.shape_cast %51 : vector<1x4x128xbf16> to vector<4x128xbf16>
      %cst_43 = arith.constant dense<0.000000e+00> : vector<16x128xf32>
      %53 = tpu.matmul %50, %52, %cst_43 {dimension_numbers = #tpu.dot_dimension_numbers<[1], [0], [0], [1], [0, 0, 1, 1], [], []>} : vector<16x4xbf16>, vector<4x128xbf16>, vector<16x128xf32> -> vector<16x128xf32>
      %54 = arith.addf %47, %53 : vector<16x128xf32>
      %c1_i32_44 = arith.constant 1 : i32
      %55 = arith.muli %8, %c1_i32_44 : i32
      %c2_i32 = arith.constant 2 : i32
      %56 = arith.addi %55, %c2_i32 : i32
      %c0_45 = arith.constant 0 : index
      %57 = arith.index_cast %56 : i32 to index
      %c0_46 = arith.constant 0 : index
      %c0_47 = arith.constant 0 : index
      %58 = vector.load %arg3[%c0_45, %57, %c0_46, %c0_47] : memref<1x18x18x4xbf16, #tpu.memory_space<vmem>>, vector<1x1x16x4xbf16>
      %59 = vector.shape_cast %58 : vector<1x1x16x4xbf16> to vector<16x4xbf16>
      %c6 = arith.constant 6 : index
      %c0_48 = arith.constant 0 : index
      %c0_49 = arith.constant 0 : index
      %60 = vector.load %arg4[%c6, %c0_48, %c0_49] : memref<9x4x128xbf16, #tpu.memory_space<vmem>>, vector<1x4x128xbf16>
      %61 = vector.shape_cast %60 : vector<1x4x128xbf16> to vector<4x128xbf16>
      %cst_50 = arith.constant dense<0.000000e+00> : vector<16x128xf32>
      %62 = tpu.matmul %59, %61, %cst_50 {dimension_numbers = #tpu.dot_dimension_numbers<[1], [0], [0], [1], [0, 0, 1, 1], [], []>} : vector<16x4xbf16>, vector<4x128xbf16>, vector<16x128xf32> -> vector<16x128xf32>
      %63 = arith.addf %54, %62 : vector<16x128xf32>
      %c0_51 = arith.constant 0 : index
      %64 = arith.index_cast %56 : i32 to index
      %c1_52 = arith.constant 1 : index
      %c0_53 = arith.constant 0 : index
      %65 = vector.load %arg3[%c0_51, %64, %c1_52, %c0_53] : memref<1x18x18x4xbf16, #tpu.memory_space<vmem>>, vector<1x1x16x4xbf16>
      %66 = vector.shape_cast %65 : vector<1x1x16x4xbf16> to vector<16x4xbf16>
      %c7 = arith.constant 7 : index
      %c0_54 = arith.constant 0 : index
      %c0_55 = arith.constant 0 : index
      %67 = vector.load %arg4[%c7, %c0_54, %c0_55] : memref<9x4x128xbf16, #tpu.memory_space<vmem>>, vector<1x4x128xbf16>
      %68 = vector.shape_cast %67 : vector<1x4x128xbf16> to vector<4x128xbf16>
      %cst_56 = arith.constant dense<0.000000e+00> : vector<16x128xf32>
      %69 = tpu.matmul %66, %68, %cst_56 {dimension_numbers = #tpu.dot_dimension_numbers<[1], [0], [0], [1], [0, 0, 1, 1], [], []>} : vector<16x4xbf16>, vector<4x128xbf16>, vector<16x128xf32> -> vector<16x128xf32>
      %70 = arith.addf %63, %69 : vector<16x128xf32>
      %c0_57 = arith.constant 0 : index
      %71 = arith.index_cast %56 : i32 to index
      %c2_58 = arith.constant 2 : index
      %c0_59 = arith.constant 0 : index
      %72 = vector.load %arg3[%c0_57, %71, %c2_58, %c0_59] : memref<1x18x18x4xbf16, #tpu.memory_space<vmem>>, vector<1x1x16x4xbf16>
      %73 = vector.shape_cast %72 : vector<1x1x16x4xbf16> to vector<16x4xbf16>
      %c8 = arith.constant 8 : index
      %c0_60 = arith.constant 0 : index
      %c0_61 = arith.constant 0 : index
      %74 = vector.load %arg4[%c8, %c0_60, %c0_61] : memref<9x4x128xbf16, #tpu.memory_space<vmem>>, vector<1x4x128xbf16>
      %75 = vector.shape_cast %74 : vector<1x4x128xbf16> to vector<4x128xbf16>
      %cst_62 = arith.constant dense<0.000000e+00> : vector<16x128xf32>
      %76 = tpu.matmul %73, %75, %cst_62 {dimension_numbers = #tpu.dot_dimension_numbers<[1], [0], [0], [1], [0, 0, 1, 1], [], []>} : vector<16x4xbf16>, vector<4x128xbf16>, vector<16x128xf32> -> vector<16x128xf32>
      %77 = arith.addf %70, %76 : vector<16x128xf32>
      %cst_63 = arith.constant 0.000000e+00 : f32
      %78 = vector.broadcast %cst_63 : f32 to vector<16x128xf32>
      %79 = arith.maximumf %77, %78 : vector<16x128xf32>
      %c0_64 = arith.constant 0 : index
      %80 = arith.index_cast %arg7 : i32 to index
      %c0_65 = arith.constant 0 : index
      %c0_66 = arith.constant 0 : index
      %81 = vector.load %arg6[%c0_64, %80, %c0_65, %c0_66] : memref<1x16x16x128xf32, #tpu.memory_space<vmem>>, vector<1x1x16x128xf32>
      %82 = vector.shape_cast %81 : vector<1x1x16x128xf32> to vector<16x128xf32>
      %83 = vector.shape_cast %79 : vector<16x128xf32> to vector<1x1x16x128xf32>
      tpu.vector_store %arg6[%c0_64, %80, %c0_65, %c0_66], %83 {strides = array<i32>} : memref<1x16x16x128xf32, #tpu.memory_space<vmem>>, vector<1x1x16x128xf32>,
    }
    return
  }
  func.func @transform_0(%arg0: i32, %arg1: i32, %arg2: i32) -> (i32, i32, i32, i32) {
    %c0_i32 = arith.constant 0 : i32
    %c0_i32_0 = arith.constant 0 : i32
    %c0_i32_1 = arith.constant 0 : i32
    %c0_i32_2 = arith.constant 0 : i32
    return %arg0, %c0_i32, %c0_i32_0, %c0_i32_1 : i32, i32, i32, i32
  }
  func.func @transform_1(%arg0: i32, %arg1: i32, %arg2: i32) -> (i32, i32, i32) {
    %c0_i32 = arith.constant 0 : i32
    %c0_i32_0 = arith.constant 0 : i32
    %c0_i32_1 = arith.constant 0 : i32
    return %c0_i32, %c0_i32_0, %arg1 : i32, i32, i32
  }
  func.func @transform_2(%arg0: i32, %arg1: i32, %arg2: i32) -> (i32, i32) {
    %c0_i32 = arith.constant 0 : i32
    %c0_i32_0 = arith.constant 0 : i32
    return %c0_i32, %arg1 : i32, i32
  }
  func.func @transform_3(%arg0: i32, %arg1: i32, %arg2: i32) -> (i32, i32, i32, i32) {
    %c0_i32 = arith.constant 0 : i32
    %c0_i32_0 = arith.constant 0 : i32
    return %arg0, %arg2, %c0_i32, %arg1 : i32, i32, i32, i32
  }
}

</mosaic_0001>

<llo_original>
// kernel: basic_conv_apply.1
$region0: #{basic_conv_apply.1}
  #allocation0 [shape = 'u32[]', space=smem, size = 0x4, offset = 0x4, fixed_abs, tag = 'smem constant byte address 0x4 - core index']
  #allocation1 [shape = 'u32[144,128]{1,0:T(1,128)}', space=vmem, size = 0x12000, scoped, tag = 'internal scratch']
  %s0 = inlined_call_operand.vmem [shape: bf16[2,18,18,4], index: 0, kind: input, shape index: {}]
  %s1 = inlined_call_operand.vmem [shape: bf16[9,4,128], index: 1, kind: input, shape index: {}]
  %s2 = inlined_call_operand.vmem [shape: f32[1,128], index: 2, kind: input, shape index: {}]
  %s3 = inlined_call_operand.vmem [shape: f32[2,16,16,128], index: 3, kind: output, shape index: {}]
  %s4 = sld [smem:[#allocation0]]
  $region52: #{basic_conv_apply.1} parent=0
    _
  %s6 = ssub.s32 1, %s4
  %s7 = scalar_select 0, %s6, %s4
  loop: start=0, step=1, limit=4
  $region2: #{basic_conv_apply.1} parent=0 // loop_pre_header
    _
  $region3: #{basic_conv_apply.1} parent=0 // loop_header
    %s9 = sphi 0, %s13
    %p10 = scmp.ge.s32.totalorder %s9, 4
    %s16 = sphi 0, %s35
    %s17 = sphi 0, %s31
    %s18 = sphi 0, %s27
    %s19 = sphi 0, %s16
    %s20 = sphi 0, %s17
    %s21 = sphi 0, %s18
    %s22 = sphi 0, %s19
    %s23 = sphi 0, %s20
    %s24 = sphi 0, %s21
    %s38 = sphi 0, %s40
    %s41 = sphi 0, %s38
    %s42 = sphi 0, %s41
    %s58 = sphi 0, %s42
    %s64 = sphi 0, %s66
    %s67 = sphi 0, %s64
    %s68 = sphi 0, %s67
    %s84 = sphi 0, %s68
    %s90 = sphi 0, %s92
    %s93 = sphi 0, %s90
    %s94 = sphi 0, %s93
    %s110 = sphi 0, %s94
    %s120 = sphi 0, %s122
    %s123 = sphi 0, %s120
    %s124 = sphi 0, %s123
    %s140 = sphi 0, %s124
  $region4: #{basic_conv_apply.1} parent=0 // loop_header_branch
    %12 = sbr.rel (%p10) target = $region8
  $region5: #{basic_conv_apply.1} parent=0 // loop_body
    %s14 = ssub.s32 %s9, 1
    %s15 = ssub.s32 %s9, 2
    %s25 = sadd.s32 1, %s18
    %p26 = scmp.ge.s32.totalorder %s25, 1
    %s27 = scalar_select %p26, 0, %s25
    %s28 = sadd.s32 1, %s17
    %s29 = scalar_select %p26, %s28, %s17
    %p30 = scmp.ge.s32.totalorder %s29, 1
    %s31 = scalar_select %p30, 0, %s29
    %s32 = sadd.s32 1, %s16
    %s33 = scalar_select %p30, %s32, %s16
    %p34 = scmp.ge.s32.totalorder %s33, 2
    %s35 = scalar_select %p34, 0, %s33
    %s36 = ssub.s32 %s16, %s35
    %p37 = scmp.eq.s32.totalorder %s36, 0
    %s39 = sadd.s32 %s38, 1
    %s40 = scalar_select %p37, %s38, %s39
    %p43 = pneg %p37
    %p44 = scmp.eq.s32.totalorder %s9, 1
    %p45 = por %p43, %p44
    %p46 = scmp.ne.s32.totalorder %s38, %s41
    %p47 = scmp.eq.s32.totalorder %s9, 0
    %p48 = por %p46, %p47
    %p49 = scmp.ne.s32.totalorder %s38, %s41
    %p50 = scmp.eq.s32.totalorder %s14, 1
    %p51 = por %p49, %p50
    %p52 = scmp.ne.s32.totalorder %s41, %s42
    %p53 = scmp.eq.s32.totalorder %s14, 0
    %p54 = por %p52, %p53
    %p55 = scmp.ne.s32.totalorder %s41, %s42
    %p56 = scmp.eq.s32.totalorder %s15, 1
    %p57 = por %p55, %p56
    %p59 = scmp.ne.s32.totalorder %s42, %s58
    %p60 = scmp.eq.s32.totalorder %s15, 0
    %p61 = por %p59, %p60
    %s62 = ssub.s32 %s17, %s31
    %p63 = scmp.eq.s32.totalorder %s62, 0
    %s65 = sadd.s32 %s64, 1
    %s66 = scalar_select %p63, %s64, %s65
    %p69 = pneg %p63
    %p70 = scmp.eq.s32.totalorder %s9, 1
    %p71 = por %p69, %p70
    %p72 = scmp.ne.s32.totalorder %s64, %s67
    %p73 = scmp.eq.s32.totalorder %s9, 0
    %p74 = por %p72, %p73
    %p75 = scmp.ne.s32.totalorder %s64, %s67
    %p76 = scmp.eq.s32.totalorder %s14, 1
    %p77 = por %p75, %p76
    %p78 = scmp.ne.s32.totalorder %s67, %s68
    %p79 = scmp.eq.s32.totalorder %s14, 0
    %p80 = por %p78, %p79
    %p81 = scmp.ne.s32.totalorder %s67, %s68
    %p82 = scmp.eq.s32.totalorder %s15, 1
    %p83 = por %p81, %p82
    %p85 = scmp.ne.s32.totalorder %s68, %s84
    %p86 = scmp.eq.s32.totalorder %s15, 0
    %p87 = por %p85, %p86
    %s88 = ssub.s32 %s17, %s31
    %p89 = scmp.eq.s32.totalorder %s88, 0
    %s91 = sadd.s32 %s90, 1
    %s92 = scalar_select %p89, %s90, %s91
    %p95 = pneg %p89
    %p96 = scmp.eq.s32.totalorder %s9, 1
    %p97 = por %p95, %p96
    %p98 = scmp.ne.s32.totalorder %s90, %s93
    %p99 = scmp.eq.s32.totalorder %s9, 0
    %p100 = por %p98, %p99
    %p101 = scmp.ne.s32.totalorder %s90, %s93
    %p102 = scmp.eq.s32.totalorder %s14, 1
    %p103 = por %p101, %p102
    %p104 = scmp.ne.s32.totalorder %s93, %s94
    %p105 = scmp.eq.s32.totalorder %s14, 0
    %p106 = por %p104, %p105
    %p107 = scmp.ne.s32.totalorder %s93, %s94
    %p108 = scmp.eq.s32.totalorder %s15, 1
    %p109 = por %p107, %p108
    %p111 = scmp.ne.s32.totalorder %s94, %s110
    %p112 = scmp.eq.s32.totalorder %s15, 0
    %p113 = por %p111, %p112
    %s114 = ssub.s32 %s16, %s35
    %s115 = ssub.s32 %s18, %s27
    %s116 = sor.u32 %s114, %s115
    %s117 = ssub.s32 %s17, %s31
    %s118 = sor.u32 %s116, %s117
    %p119 = scmp.eq.s32.totalorder %s118, 0
    %s121 = sadd.s32 %s120, 1
    %s122 = scalar_select %p119, %s120, %s121
    %p125 = pneg %p119
    %p126 = scmp.eq.s32.totalorder %s9, 1
    %p127 = por %p125, %p126
    %p128 = scmp.ne.s32.totalorder %s120, %s123
    %p129 = scmp.eq.s32.totalorder %s9, 0
    %p130 = por %p128, %p129
    %p131 = scmp.ne.s32.totalorder %s120, %s123
    %p132 = scmp.eq.s32.totalorder %s14, 1
    %p133 = por %p131, %p132
    %p134 = scmp.ne.s32.totalorder %s123, %s124
    %p135 = scmp.eq.s32.totalorder %s14, 0
    %p136 = por %p134, %p135
    %p137 = scmp.ne.s32.totalorder %s123, %s124
    %p138 = scmp.eq.s32.totalorder %s15, 1
    %p139 = por %p137, %p138
    %p141 = scmp.ne.s32.totalorder %s124, %s140
    %p142 = scmp.eq.s32.totalorder %s15, 0
    %p143 = por %p141, %p142
    %p144 = scmp.le.s32.totalorder 1, %s9
    %p145 = scmp.lt.s32.totalorder %s9, 3
    %p146 = pnand %p144, %p145
    %p147 = pneg %p146
    // Predicated region
    $region9: #{basic_conv_apply.1} parent=5 // pred_check
      _
    $region10: #{basic_conv_apply.1} parent=5 // pred_check_branch
      %149 = sbr.rel (%p146) target = $region12
    $region11: #{basic_conv_apply.1} parent=5 // pred_region
      %s150 = ssub.s32 %s9, 1
      // Predicated region
      $region13: #{basic_conv_apply.1} parent=11 // pred_check
        %p151 = pneg %p80
      $region14: #{basic_conv_apply.1} parent=11 // pred_check_branch
        %153 = sbr.rel (%p151) target = $region16
      $region15: #{basic_conv_apply.1} parent=11 // pred_region
        %p154 = scmp.lt.s32.totalorder %s20, 0
        %s155 = scalar_select %p154, %s20, 0
        %s156 = smul.addr %s155, 2
        %s157 = scalar_lea.vmem %s1, %s156
      $region16: #{basic_conv_apply.1} parent=11 // pred_fallthru
        _
      // Predicated region
      $region17: #{basic_conv_apply.1} parent=11 // pred_check
        %p158 = pneg %p106
      $region18: #{basic_conv_apply.1} parent=11 // pred_check_branch
        %160 = sbr.rel (%p158) target = $region20
      $region19: #{basic_conv_apply.1} parent=11 // pred_region
        %p161 = scmp.lt.s32.totalorder %s20, 0
        %s162 = scalar_select %p161, %s20, 0
        %s163 = scalar_lea.vmem %s2, %s162
      $region20: #{basic_conv_apply.1} parent=11 // pred_fallthru
        _
    $region12: #{basic_conv_apply.1} parent=5 // pred_fallthru
      _
    %p164 = scmp.lt.s32.totalorder %s9, 2
    // Predicated region
    $region21: #{basic_conv_apply.1} parent=5 // pred_check
      %p165 = pneg %p164
    $region22: #{basic_conv_apply.1} parent=5 // pred_check_branch
      %167 = sbr.rel (%p165) target = $region24
    $region23: #{basic_conv_apply.1} parent=5 // pred_region
      // Predicated region
      $region25: #{basic_conv_apply.1} parent=23 // pred_check
        %p168 = pneg %p48
      $region26: #{basic_conv_apply.1} parent=23 // pred_check_branch
        %170 = sbr.rel (%p168) target = $region28
      $region27: #{basic_conv_apply.1} parent=23 // pred_region
        %p171 = scmp.lt.s32.totalorder %s16, 1
        %s172 = scalar_select %p171, %s16, 1
        %s173 = smul.addr %s172, 54
        %s174 = smul.addr %s173, 4
        %s175 = scalar_lea.vmem %s0, %s174
      $region28: #{basic_conv_apply.1} parent=23 // pred_fallthru
        _
    $region24: #{basic_conv_apply.1} parent=5 // pred_fallthru
      _
    %p176 = scmp.le.s32.totalorder 1, %s9
    %p177 = scmp.lt.s32.totalorder %s9, 3
    %p178 = pnand %p176, %p177
    %p179 = pneg %p178
    // Predicated region
    $region29: #{basic_conv_apply.1} parent=5 // pred_check
      _
    $region30: #{basic_conv_apply.1} parent=5 // pred_check_branch
      %181 = sbr.rel (%p178) target = $region32
    $region31: #{basic_conv_apply.1} parent=5 // pred_region
      %s182 = ssub.s32 %s9, 1
      %p183 = scmp.lt.s32.totalorder %s19, 1
      %s184 = scalar_select %p183, %s19, 1
      %s185 = smul.addr %s184, 54
      %s186 = smul.addr %s185, 4
      %s187 = scalar_lea.vmem %s0, %s186
      %p188 = pneg %p54
      %p189 = pneg %p51
      %p190 = scmp.lt.s32.totalorder %s20, 0
      %s191 = scalar_select %p190, %s20, 0
      %s192 = smul.addr %s191, 2
      %s193 = scalar_lea.vmem %s1, %s192
      %p194 = pneg %p80
      %p195 = pneg %p77
      %p196 = scmp.lt.s32.totalorder %s20, 0
      %s197 = scalar_select %p196, %s20, 0
      %s198 = scalar_lea.vmem %s2, %s197
      %p199 = pneg %p106
      %p200 = pneg %p103
      %p201 = pneg %p136
      %p202 = pneg %p133
      %s203 = smul.u32 16, %s21
      %p204 = scmp.lt.s32.totalorder %s19, 1
      %s205 = scalar_select %p204, %s19, 1
      %p206 = scmp.lt.s32.totalorder %s203, 15
      %s207 = scalar_select %p206, %s203, 15
      %p208 = scmp.lt.s32.totalorder %s20, 0
      %s209 = scalar_select %p208, %s20, 0
      %s210 = smul.addr %s207, 2
      %s211 = sadd.s32 %s209, %s210
      %s212 = smul.addr %s205, 32
      %s213 = sadd.s32 %s211, %s212
      %s214 = smul.addr %s213, 8
      %s215 = scalar_lea.vmem %s3, %s214
      %p216 = scmp.lt.s32.totalorder %s19, 1
      %s217 = scalar_select %p216, %s19, 1
      %s218 = smul.addr %s217, 54
      %s219 = smul.addr %s218, 4
      %s220 = scalar_lea.vmem %s0, %s219
      %p221 = scmp.lt.s32.totalorder %s20, 0
      %s222 = scalar_select %p221, %s20, 0
      %s223 = smul.addr %s222, 2
      %s224 = scalar_lea.vmem %s1, %s223
      %p225 = scmp.lt.s32.totalorder %s20, 0
      %s226 = scalar_select %p225, %s20, 0
      %s227 = scalar_lea.vmem %s2, %s226
      %s228 = smul.u32 16, %s21
      %p229 = scmp.lt.s32.totalorder %s19, 1
      %s230 = scalar_select %p229, %s19, 1
      %p231 = scmp.lt.s32.totalorder %s228, 15
      %s232 = scalar_select %p231, %s228, 15
      %p233 = scmp.lt.s32.totalorder %s20, 0
      %s234 = scalar_select %p233, %s20, 0
      %s235 = smul.addr %s232, 2
      %s236 = sadd.s32 %s234, %s235
      %s237 = smul.addr %s230, 32
      %s238 = sadd.s32 %s236, %s237
      %s239 = smul.addr %s238, 8
      %s240 = scalar_lea.vmem %s3, %s239
      %s241 = smul.u32 16, %s21
      %s243 = smul.u32 %s21, 16
      %s244 = ssub.s32 16, %s243
      %p245 = scmp.lt.s32.totalorder %s244, 16
      %s246 = scalar_select %p245, %s244, 16
      %v247 = vld [vmem:[%s227] sm:$0x1]
      %v249 = vlaneseq
      %v250 = vshrl.u32 %v249, 7
      %v251 = vsub.s32 0, %v250
      %v252 = vrot.slane %v247, %v251
      // While loop
      $region33: #{basic_conv_apply.1} parent=31 // loop_pre_header
        _
      $region34: #{basic_conv_apply.1} parent=31 // loop_header
        %s255 = sphi 0, %s257
        %p256 = scmp.ge.s32.totalorder %s255, %s246
      $region35: #{basic_conv_apply.1} parent=31 // loop_header_branch
        %259 = sbr.rel (%p256) target = $region39
      $region36: #{basic_conv_apply.1} parent=31 // loop_body
        %s260 = sadd.s32 %s243, %s255
        %s261 = smul.u32 %s260, 3
        %s262 = smul.addr %s261, 4
        %s263 = scalar_lea.vmem %s220, %s262
        %v264 = vld [vmem:[%s263] sm:$0xf]
        %v265 = vld [vmem:[%s263 + $0x4] sm:$0xf]
        %v266 = vld [vmem:[%s224] sm:$0x3]
        %v269 = vunpack.c.l.b16 %v264
        %v270 = vunpack.c.l.b16 %v265
        %v271 = vpack.c.b16 %v270, %v269
        %vm272 = vcmask 31744
        %v274 = vsel %vm272, %v271, 0
        %vm276 = vcmask 1041408
        %v278 = vsel %vm276, %v266, 0
        %280 = vmatprep.subr.bf16.mxu0 0
        %281 = vmatpush1.bf16.msra.mxu0 %v278
        %282 = vmatprep.subr.bf16.mxu0 0
        %283 = vmatpush1.bf16.msra.mxu0 0
        %284 = vmatprep.subr.bf16.mxu0 0
        %285 = vmatpush1.bf16.msra.mxu0 0
        %286 = vmatprep.subr.bf16.mxu0 0
        %287 = vmatpush1.bf16.msra.mxu0 0
        %288 = vmatprep.subr.bf16.mxu0 0
        %289 = vmatpush1.bf16.msra.mxu0 0
        %290 = vmatprep.subr.bf16.mxu0 0
        %291 = vmatpush1.bf16.msra.mxu0 0
        %292 = vmatprep.subr.bf16.mxu0 0
        %293 = vmatpush1.bf16.msra.mxu0 0
        %294 = vmatprep.subr.bf16.mxu0 0
        %295 = vmatpush1.bf16.msra.mxu0 0
        %296 = vmatprep.subr.bf16.mxu0 0
        %297 = vmatpush1.bf16.msra.mxu0 0
        %298 = vmatprep.subr.bf16.mxu0 0
        %299 = vmatpush1.bf16.msra.mxu0 0
        %300 = vmatprep.subr.bf16.mxu0 0
        %301 = vmatpush1.bf16.msra.mxu0 0
        %302 = vmatprep.subr.bf16.mxu0 0
        %303 = vmatpush1.bf16.msra.mxu0 0
        %304 = vmatprep.subr.bf16.mxu0 0
        %305 = vmatpush1.bf16.msra.mxu0 0
        %306 = vmatprep.subr.bf16.mxu0 0
        %307 = vmatpush1.bf16.msra.mxu0 0
        %308 = vmatprep.subr.bf16.mxu0 0
        %309 = vmatpush1.bf16.msra.mxu0 0
        %310 = vmatprep.subr.bf16.mxu0 0
        %311 = vmatpush1.bf16.msra.mxu0 0
        %312 = vmatprep.mubr.bf16.mxu0 0
        %313 = vmatmul.mubr.bf16.gmra.mrb[0].mxu0 %v274
        %v314 = vpop.f32.mrb[0].mxu0
        %v315 = vadd.f32 0.0, %v314
        %v316 = vpop.f32.mrb[0].mxu0
        %v317 = vpop.f32.mrb[0].mxu0
        %v318 = vadd.f32 0.0, %v317
        %v319 = vpop.f32.mrb[0].mxu0
        %320 = vdwg.mxu0
        %v321 = vadd.f32 %v252, %v315
        %v322 = vadd.f32 %v252, %v318
        %v323 = vld [vmem:[%s263] sm:$0xf]
        %v324 = vld [vmem:[%s263 + $0x4] sm:$0xf]
        %v325 = vld [vmem:[%s263 + $0x8] sm:$0x1]
        %s326 = scalar_lea.vmem %s224, 2
        %v327 = vld [vmem:[%s326] sm:$0x3]
        %v331 = vunpack.c.l.b16 %v323
        %v332 = vunpack.c.l.b16 %v324
        %v333 = vunpack.c.l.b16 %v325
        %v334 = vpack.c.b16 %v332, %v331
        %v335 = vpack.c.b16 %v333, %v333
        %vm336 = vsmask.f32 7424
        %v338 = vshrl.u32 %v334, 16
        %v340 = vshll.u32 %v334, 16
        %v342 = vrot.slane %v340, 1
        %v343 = vor.u32 %v338, %v342
        %v345 = vshll.u32 %v335, 16
        %v347 = vrot.slane %v345, 1
        %v348 = vsel %vm336, %v343, %v347
        %v350 = vsel %vm272, %v348, 0
        %v353 = vsel %vm276, %v327, 0
        %355 = vmatprep.subr.bf16.mxu0 0
        %356 = vmatpush1.bf16.msra.mxu0 %v353
        %357 = vmatprep.subr.bf16.mxu0 0
        %358 = vmatpush1.bf16.msra.mxu0 0
        %359 = vmatprep.subr.bf16.mxu0 0
        %360 = vmatpush1.bf16.msra.mxu0 0
        %361 = vmatprep.subr.bf16.mxu0 0
        %362 = vmatpush1.bf16.msra.mxu0 0
        %363 = vmatprep.subr.bf16.mxu0 0
        %364 = vmatpush1.bf16.msra.mxu0 0
        %365 = vmatprep.subr.bf16.mxu0 0
        %366 = vmatpush1.bf16.msra.mxu0 0
        %367 = vmatprep.subr.bf16.mxu0 0
        %368 = vmatpush1.bf16.msra.mxu0 0
        %369 = vmatprep.subr.bf16.mxu0 0
        %370 = vmatpush1.bf16.msra.mxu0 0
        %371 = vmatprep.subr.bf16.mxu0 0
        %372 = vmatpush1.bf16.msra.mxu0 0
        %373 = vmatprep.subr.bf16.mxu0 0
        %374 = vmatpush1.bf16.msra.mxu0 0
        %375 = vmatprep.subr.bf16.mxu0 0
        %376 = vmatpush1.bf16.msra.mxu0 0
        %377 = vmatprep.subr.bf16.mxu0 0
        %378 = vmatpush1.bf16.msra.mxu0 0
        %379 = vmatprep.subr.bf16.mxu0 0
        %380 = vmatpush1.bf16.msra.mxu0 0
        %381 = vmatprep.subr.bf16.mxu0 0
        %382 = vmatpush1.bf16.msra.mxu0 0
        %383 = vmatprep.subr.bf16.mxu0 0
        %384 = vmatpush1.bf16.msra.mxu0 0
        %385 = vmatprep.subr.bf16.mxu0 0
        %386 = vmatpush1.bf16.msra.mxu0 0
        %387 = vmatprep.mubr.bf16.mxu0 0
        %388 = vmatmul.mubr.bf16.gmra.mrb[0].mxu0 %v350
        %v389 = vpop.f32.mrb[0].mxu0
        %v390 = vadd.f32 0.0, %v389
        %v391 = vpop.f32.mrb[0].mxu0
        %v392 = vpop.f32.mrb[0].mxu0
        %v393 = vadd.f32 0.0, %v392
        %v394 = vpop.f32.mrb[0].mxu0
        %395 = vdwg.mxu0
        %v396 = vadd.f32 %v321, %v390
        %v397 = vadd.f32 %v322, %v393
        %v398 = vld [vmem:[%s263] sm:$0xe]
        %s399 = scalar_lea.vmem %s224, 4
        %v400 = vld [vmem:[%s399] sm:$0x3]
        %v402 = vunpack.c.l.b16 %v398
        %v403 = vpack.c.b16 %v332, %v402
        %vm404 = vcmask 1046528
        %v405 = vrot.slane %v403, 1
        %v406 = vrot.slane %v335, 1
        %v407 = vsel %vm404, %v405, %v406
        %v409 = vsel %vm272, %v407, 0
        %v412 = vsel %vm276, %v400, 0
        %414 = vmatprep.subr.bf16.mxu0 0
        %415 = vmatpush1.bf16.msra.mxu0 %v412
        %416 = vmatprep.subr.bf16.mxu0 0
        %417 = vmatpush1.bf16.msra.mxu0 0
        %418 = vmatprep.subr.bf16.mxu0 0
        %419 = vmatpush1.bf16.msra.mxu0 0
        %420 = vmatprep.subr.bf16.mxu0 0
        %421 = vmatpush1.bf16.msra.mxu0 0
        %422 = vmatprep.subr.bf16.mxu0 0
        %423 = vmatpush1.bf16.msra.mxu0 0
        %424 = vmatprep.subr.bf16.mxu0 0
        %425 = vmatpush1.bf16.msra.mxu0 0
        %426 = vmatprep.subr.bf16.mxu0 0
        %427 = vmatpush1.bf16.msra.mxu0 0
        %428 = vmatprep.subr.bf16.mxu0 0
        %429 = vmatpush1.bf16.msra.mxu0 0
        %430 = vmatprep.subr.bf16.mxu0 0
        %431 = vmatpush1.bf16.msra.mxu0 0
        %432 = vmatprep.subr.bf16.mxu0 0
        %433 = vmatpush1.bf16.msra.mxu0 0
        %434 = vmatprep.subr.bf16.mxu0 0
        %435 = vmatpush1.bf16.msra.mxu0 0
        %436 = vmatprep.subr.bf16.mxu0 0
        %437 = vmatpush1.bf16.msra.mxu0 0
        %438 = vmatprep.subr.bf16.mxu0 0
        %439 = vmatpush1.bf16.msra.mxu0 0
        %440 = vmatprep.subr.bf16.mxu0 0
        %441 = vmatpush1.bf16.msra.mxu0 0
        %442 = vmatprep.subr.bf16.mxu0 0
        %443 = vmatpush1.bf16.msra.mxu0 0
        %444 = vmatprep.subr.bf16.mxu0 0
        %445 = vmatpush1.bf16.msra.mxu0 0
        %446 = vmatprep.mubr.bf16.mxu0 0
        %447 = vmatmul.mubr.bf16.gmra.mrb[0].mxu0 %v409
        %v448 = vpop.f32.mrb[0].mxu0
        %v449 = vadd.f32 0.0, %v448
        %v450 = vpop.f32.mrb[0].mxu0
        %v451 = vpop.f32.mrb[0].mxu0
        %v452 = vadd.f32 0.0, %v451
        %v453 = vpop.f32.mrb[0].mxu0
        %454 = vdwg.mxu0
        %v455 = vadd.f32 %v396, %v449
        %v456 = vadd.f32 %v397, %v452
        %s457 = sadd.s32 %s260, 1
        %s458 = smul.u32 %s457, 3
        %s459 = smul.addr %s458, 4
        %s460 = scalar_lea.vmem %s220, %s459
        %v461 = vld [vmem:[%s460] sm:$0xf]
        %v462 = vld [vmem:[%s460 + $0x4] sm:$0xf]
        %s463 = scalar_lea.vmem %s224, 6
        %v464 = vld [vmem:[%s463] sm:$0x3]
        %v467 = vunpack.c.l.b16 %v461
        %v468 = vunpack.c.l.b16 %v462
        %v469 = vpack.c.b16 %v468, %v467
        %v471 = vsel %vm272, %v469, 0
        %v474 = vsel %vm276, %v464, 0
        %476 = vmatprep.subr.bf16.mxu0 0
        %477 = vmatpush1.bf16.msra.mxu0 %v474
        %478 = vmatprep.subr.bf16.mxu0 0
        %479 = vmatpush1.bf16.msra.mxu0 0
        %480 = vmatprep.subr.bf16.mxu0 0
        %481 = vmatpush1.bf16.msra.mxu0 0
        %482 = vmatprep.subr.bf16.mxu0 0
        %483 = vmatpush1.bf16.msra.mxu0 0
        %484 = vmatprep.subr.bf16.mxu0 0
        %485 = vmatpush1.bf16.msra.mxu0 0
        %486 = vmatprep.subr.bf16.mxu0 0
        %487 = vmatpush1.bf16.msra.mxu0 0
        %488 = vmatprep.subr.bf16.mxu0 0
        %489 = vmatpush1.bf16.msra.mxu0 0
        %490 = vmatprep.subr.bf16.mxu0 0
        %491 = vmatpush1.bf16.msra.mxu0 0
        %492 = vmatprep.subr.bf16.mxu0 0
        %493 = vmatpush1.bf16.msra.mxu0 0
        %494 = vmatprep.subr.bf16.mxu0 0
        %495 = vmatpush1.bf16.msra.mxu0 0
        %496 = vmatprep.subr.bf16.mxu0 0
        %497 = vmatpush1.bf16.msra.mxu0 0
        %498 = vmatprep.subr.bf16.mxu0 0
        %499 = vmatpush1.bf16.msra.mxu0 0
        %500 = vmatprep.subr.bf16.mxu0 0
        %501 = vmatpush1.bf16.msra.mxu0 0
        %502 = vmatprep.subr.bf16.mxu0 0
        %503 = vmatpush1.bf16.msra.mxu0 0
        %504 = vmatprep.subr.bf16.mxu0 0
        %505 = vmatpush1.bf16.msra.mxu0 0
        %506 = vmatprep.subr.bf16.mxu0 0
        %507 = vmatpush1.bf16.msra.mxu0 0
        %508 = vmatprep.mubr.bf16.mxu0 0
        %509 = vmatmul.mubr.bf16.gmra.mrb[0].mxu0 %v471
        %v510 = vpop.f32.mrb[0].mxu0
        %v511 = vadd.f32 0.0, %v510
        %v512 = vpop.f32.mrb[0].mxu0
        %v513 = vpop.f32.mrb[0].mxu0
        %v514 = vadd.f32 0.0, %v513
        %v515 = vpop.f32.mrb[0].mxu0
        %516 = vdwg.mxu0
        %v517 = vadd.f32 %v455, %v511
        %v518 = vadd.f32 %v456, %v514
        %v519 = vld [vmem:[%s460] sm:$0xf]
        %v520 = vld [vmem:[%s460 + $0x4] sm:$0xf]
        %v521 = vld [vmem:[%s460 + $0x8] sm:$0x1]
        %s522 = scalar_lea.vmem %s224, 8
        %v523 = vld [vmem:[%s522] sm:$0x3]
        %v527 = vunpack.c.l.b16 %v519
        %v528 = vunpack.c.l.b16 %v520
        %v529 = vunpack.c.l.b16 %v521
        %v530 = vpack.c.b16 %v528, %v527
        %v531 = vpack.c.b16 %v529, %v529
        %v533 = vshrl.u32 %v530, 16
        %v535 = vshll.u32 %v530, 16
        %v537 = vrot.slane %v535, 1
        %v538 = vor.u32 %v533, %v537
        %v540 = vshll.u32 %v531, 16
        %v542 = vrot.slane %v540, 1
        %v543 = vsel %vm336, %v538, %v542
        %v545 = vsel %vm272, %v543, 0
        %v548 = vsel %vm276, %v523, 0
        %550 = vmatprep.subr.bf16.mxu0 0
        %551 = vmatpush1.bf16.msra.mxu0 %v548
        %552 = vmatprep.subr.bf16.mxu0 0
        %553 = vmatpush1.bf16.msra.mxu0 0
        %554 = vmatprep.subr.bf16.mxu0 0
        %555 = vmatpush1.bf16.msra.mxu0 0
        %556 = vmatprep.subr.bf16.mxu0 0
        %557 = vmatpush1.bf16.msra.mxu0 0
        %558 = vmatprep.subr.bf16.mxu0 0
        %559 = vmatpush1.bf16.msra.mxu0 0
        %560 = vmatprep.subr.bf16.mxu0 0
        %561 = vmatpush1.bf16.msra.mxu0 0
        %562 = vmatprep.subr.bf16.mxu0 0
        %563 = vmatpush1.bf16.msra.mxu0 0
        %564 = vmatprep.subr.bf16.mxu0 0
        %565 = vmatpush1.bf16.msra.mxu0 0
        %566 = vmatprep.subr.bf16.mxu0 0
        %567 = vmatpush1.bf16.msra.mxu0 0
        %568 = vmatprep.subr.bf16.mxu0 0
        %569 = vmatpush1.bf16.msra.mxu0 0
        %570 = vmatprep.subr.bf16.mxu0 0
        %571 = vmatpush1.bf16.msra.mxu0 0
        %572 = vmatprep.subr.bf16.mxu0 0
        %573 = vmatpush1.bf16.msra.mxu0 0
        %574 = vmatprep.subr.bf16.mxu0 0
        %575 = vmatpush1.bf16.msra.mxu0 0
        %576 = vmatprep.subr.bf16.mxu0 0
        %577 = vmatpush1.bf16.msra.mxu0 0
        %578 = vmatprep.subr.bf16.mxu0 0
        %579 = vmatpush1.bf16.msra.mxu0 0
        %580 = vmatprep.subr.bf16.mxu0 0
        %581 = vmatpush1.bf16.msra.mxu0 0
        %582 = vmatprep.mubr.bf16.mxu0 0
        %583 = vmatmul.mubr.bf16.gmra.mrb[0].mxu0 %v545
        %v584 = vpop.f32.mrb[0].mxu0
        %v585 = vadd.f32 0.0, %v584
        %v586 = vpop.f32.mrb[0].mxu0
        %v587 = vpop.f32.mrb[0].mxu0
        %v588 = vadd.f32 0.0, %v587
        %v589 = vpop.f32.mrb[0].mxu0
        %590 = vdwg.mxu0
        %v591 = vadd.f32 %v517, %v585
        %v592 = vadd.f32 %v518, %v588
        %v593 = vld [vmem:[%s460] sm:$0xe]
        %s594 = scalar_lea.vmem %s224, 10
        %v595 = vld [vmem:[%s594] sm:$0x3]
        %v597 = vunpack.c.l.b16 %v593
        %v598 = vpack.c.b16 %v528, %v597
        %v599 = vrot.slane %v598, 1
        %v600 = vrot.slane %v531, 1
        %v601 = vsel %vm404, %v599, %v600
        %v603 = vsel %vm272, %v601, 0
        %v606 = vsel %vm276, %v595, 0
        %608 = vmatprep.subr.bf16.mxu0 0
        %609 = vmatpush1.bf16.msra.mxu0 %v606
        %610 = vmatprep.subr.bf16.mxu0 0
        %611 = vmatpush1.bf16.msra.mxu0 0
        %612 = vmatprep.subr.bf16.mxu0 0
        %613 = vmatpush1.bf16.msra.mxu0 0
        %614 = vmatprep.subr.bf16.mxu0 0
        %615 = vmatpush1.bf16.msra.mxu0 0
        %616 = vmatprep.subr.bf16.mxu0 0
        %617 = vmatpush1.bf16.msra.mxu0 0
        %618 = vmatprep.subr.bf16.mxu0 0
        %619 = vmatpush1.bf16.msra.mxu0 0
        %620 = vmatprep.subr.bf16.mxu0 0
        %621 = vmatpush1.bf16.msra.mxu0 0
        %622 = vmatprep.subr.bf16.mxu0 0
        %623 = vmatpush1.bf16.msra.mxu0 0
        %624 = vmatprep.subr.bf16.mxu0 0
        %625 = vmatpush1.bf16.msra.mxu0 0
        %626 = vmatprep.subr.bf16.mxu0 0
        %627 = vmatpush1.bf16.msra.mxu0 0
        %628 = vmatprep.subr.bf16.mxu0 0
        %629 = vmatpush1.bf16.msra.mxu0 0
        %630 = vmatprep.subr.bf16.mxu0 0
        %631 = vmatpush1.bf16.msra.mxu0 0
        %632 = vmatprep.subr.bf16.mxu0 0
        %633 = vmatpush1.bf16.msra.mxu0 0
        %634 = vmatprep.subr.bf16.mxu0 0
        %635 = vmatpush1.bf16.msra.mxu0 0
        %636 = vmatprep.subr.bf16.mxu0 0
        %637 = vmatpush1.bf16.msra.mxu0 0
        %638 = vmatprep.subr.bf16.mxu0 0
        %639 = vmatpush1.bf16.msra.mxu0 0
        %640 = vmatprep.mubr.bf16.mxu0 0
        %641 = vmatmul.mubr.bf16.gmra.mrb[0].mxu0 %v603
        %v642 = vpop.f32.mrb[0].mxu0
        %v643 = vadd.f32 0.0, %v642
        %v644 = vpop.f32.mrb[0].mxu0
        %v645 = vpop.f32.mrb[0].mxu0
        %v646 = vadd.f32 0.0, %v645
        %v647 = vpop.f32.mrb[0].mxu0
        %648 = vdwg.mxu0
        %v649 = vadd.f32 %v591, %v643
        %v650 = vadd.f32 %v592, %v646
        %s651 = sadd.s32 %s260, 2
        %s652 = smul.u32 %s651, 3
        %s653 = smul.addr %s652, 4
        %s654 = scalar_lea.vmem %s220, %s653
        %v655 = vld [vmem:[%s654] sm:$0xf]
        %v656 = vld [vmem:[%s654 + $0x4] sm:$0xf]
        %s657 = scalar_lea.vmem %s224, 12
        %v658 = vld [vmem:[%s657] sm:$0x3]
        %v661 = vunpack.c.l.b16 %v655
        %v662 = vunpack.c.l.b16 %v656
        %v663 = vpack.c.b16 %v662, %v661
        %v665 = vsel %vm272, %v663, 0
        %v668 = vsel %vm276, %v658, 0
        %670 = vmatprep.subr.bf16.mxu0 0
        %671 = vmatpush1.bf16.msra.mxu0 %v668
        %672 = vmatprep.subr.bf16.mxu0 0
        %673 = vmatpush1.bf16.msra.mxu0 0
        %674 = vmatprep.subr.bf16.mxu0 0
        %675 = vmatpush1.bf16.msra.mxu0 0
        %676 = vmatprep.subr.bf16.mxu0 0
        %677 = vmatpush1.bf16.msra.mxu0 0
        %678 = vmatprep.subr.bf16.mxu0 0
        %679 = vmatpush1.bf16.msra.mxu0 0
        %680 = vmatprep.subr.bf16.mxu0 0
        %681 = vmatpush1.bf16.msra.mxu0 0
        %682 = vmatprep.subr.bf16.mxu0 0
        %683 = vmatpush1.bf16.msra.mxu0 0
        %684 = vmatprep.subr.bf16.mxu0 0
        %685 = vmatpush1.bf16.msra.mxu0 0
        %686 = vmatprep.subr.bf16.mxu0 0
        %687 = vmatpush1.bf16.msra.mxu0 0
        %688 = vmatprep.subr.bf16.mxu0 0
        %689 = vmatpush1.bf16.msra.mxu0 0
        %690 = vmatprep.subr.bf16.mxu0 0
        %691 = vmatpush1.bf16.msra.mxu0 0
        %692 = vmatprep.subr.bf16.mxu0 0
        %693 = vmatpush1.bf16.msra.mxu0 0
        %694 = vmatprep.subr.bf16.mxu0 0
        %695 = vmatpush1.bf16.msra.mxu0 0
        %696 = vmatprep.subr.bf16.mxu0 0
        %697 = vmatpush1.bf16.msra.mxu0 0
        %698 = vmatprep.subr.bf16.mxu0 0
        %699 = vmatpush1.bf16.msra.mxu0 0
        %700 = vmatprep.subr.bf16.mxu0 0
        %701 = vmatpush1.bf16.msra.mxu0 0
        %702 = vmatprep.mubr.bf16.mxu0 0
        %703 = vmatmul.mubr.bf16.gmra.mrb[0].mxu0 %v665
        %v704 = vpop.f32.mrb[0].mxu0
        %v705 = vadd.f32 0.0, %v704
        %v706 = vpop.f32.mrb[0].mxu0
        %v707 = vpop.f32.mrb[0].mxu0
        %v708 = vadd.f32 0.0, %v707
        %v709 = vpop.f32.mrb[0].mxu0
        %710 = vdwg.mxu0
        %v711 = vadd.f32 %v649, %v705
        %v712 = vadd.f32 %v650, %v708
        %v713 = vld [vmem:[%s654] sm:$0xf]
        %v714 = vld [vmem:[%s654 + $0x4] sm:$0xf]
        %v715 = vld [vmem:[%s654 + $0x8] sm:$0x1]
        %s716 = scalar_lea.vmem %s224, 14
        %v717 = vld [vmem:[%s716] sm:$0x3]
        %v721 = vunpack.c.l.b16 %v713
        %v722 = vunpack.c.l.b16 %v714
        %v723 = vunpack.c.l.b16 %v715
        %v724 = vpack.c.b16 %v722, %v721
        %v725 = vpack.c.b16 %v723, %v723
        %v727 = vshrl.u32 %v724, 16
        %v729 = vshll.u32 %v724, 16
        %v731 = vrot.slane %v729, 1
        %v732 = vor.u32 %v727, %v731
        %v734 = vshll.u32 %v725, 16
        %v736 = vrot.slane %v734, 1
        %v737 = vsel %vm336, %v732, %v736
        %v739 = vsel %vm272, %v737, 0
        %v742 = vsel %vm276, %v717, 0
        %744 = vmatprep.subr.bf16.mxu0 0
        %745 = vmatpush1.bf16.msra.mxu0 %v742
        %746 = vmatprep.subr.bf16.mxu0 0
        %747 = vmatpush1.bf16.msra.mxu0 0
        %748 = vmatprep.subr.bf16.mxu0 0
        %749 = vmatpush1.bf16.msra.mxu0 0
        %750 = vmatprep.subr.bf16.mxu0 0
        %751 = vmatpush1.bf16.msra.mxu0 0
        %752 = vmatprep.subr.bf16.mxu0 0
        %753 = vmatpush1.bf16.msra.mxu0 0
        %754 = vmatprep.subr.bf16.mxu0 0
        %755 = vmatpush1.bf16.msra.mxu0 0
        %756 = vmatprep.subr.bf16.mxu0 0
        %757 = vmatpush1.bf16.msra.mxu0 0
        %758 = vmatprep.subr.bf16.mxu0 0
        %759 = vmatpush1.bf16.msra.mxu0 0
        %760 = vmatprep.subr.bf16.mxu0 0
        %761 = vmatpush1.bf16.msra.mxu0 0
        %762 = vmatprep.subr.bf16.mxu0 0
        %763 = vmatpush1.bf16.msra.mxu0 0
        %764 = vmatprep.subr.bf16.mxu0 0
        %765 = vmatpush1.bf16.msra.mxu0 0
        %766 = vmatprep.subr.bf16.mxu0 0
        %767 = vmatpush1.bf16.msra.mxu0 0
        %768 = vmatprep.subr.bf16.mxu0 0
        %769 = vmatpush1.bf16.msra.mxu0 0
        %770 = vmatprep.subr.bf16.mxu0 0
        %771 = vmatpush1.bf16.msra.mxu0 0
        %772 = vmatprep.subr.bf16.mxu0 0
        %773 = vmatpush1.bf16.msra.mxu0 0
        %774 = vmatprep.subr.bf16.mxu0 0
        %775 = vmatpush1.bf16.msra.mxu0 0
        %776 = vmatprep.mubr.bf16.mxu0 0
        %777 = vmatmul.mubr.bf16.gmra.mrb[0].mxu0 %v739
        %v778 = vpop.f32.mrb[0].mxu0
        %v779 = vadd.f32 0.0, %v778
        %v780 = vpop.f32.mrb[0].mxu0
        %v781 = vpop.f32.mrb[0].mxu0
        %v782 = vadd.f32 0.0, %v781
        %v783 = vpop.f32.mrb[0].mxu0
        %784 = vdwg.mxu0
        %v785 = vadd.f32 %v711, %v779
        %v786 = vadd.f32 %v712, %v782
        %v787 = vld [vmem:[%s654] sm:$0xe]
        %s788 = scalar_lea.vmem %s224, 16
        %v789 = vld [vmem:[%s788] sm:$0x3]
        %v791 = vunpack.c.l.b16 %v787
        %v792 = vpack.c.b16 %v722, %v791
        %v793 = vrot.slane %v792, 1
        %v794 = vrot.slane %v725, 1
        %v795 = vsel %vm404, %v793, %v794
        %v797 = vsel %vm272, %v795, 0
        %v800 = vsel %vm276, %v789, 0
        %802 = vmatprep.subr.bf16.mxu0 0
        %803 = vmatpush1.bf16.msra.mxu0 %v800
        %804 = vmatprep.subr.bf16.mxu0 0
        %805 = vmatpush1.bf16.msra.mxu0 0
        %806 = vmatprep.subr.bf16.mxu0 0
        %807 = vmatpush1.bf16.msra.mxu0 0
        %808 = vmatprep.subr.bf16.mxu0 0
        %809 = vmatpush1.bf16.msra.mxu0 0
        %810 = vmatprep.subr.bf16.mxu0 0
        %811 = vmatpush1.bf16.msra.mxu0 0
        %812 = vmatprep.subr.bf16.mxu0 0
        %813 = vmatpush1.bf16.msra.mxu0 0
        %814 = vmatprep.subr.bf16.mxu0 0
        %815 = vmatpush1.bf16.msra.mxu0 0
        %816 = vmatprep.subr.bf16.mxu0 0
        %817 = vmatpush1.bf16.msra.mxu0 0
        %818 = vmatprep.subr.bf16.mxu0 0
        %819 = vmatpush1.bf16.msra.mxu0 0
        %820 = vmatprep.subr.bf16.mxu0 0
        %821 = vmatpush1.bf16.msra.mxu0 0
        %822 = vmatprep.subr.bf16.mxu0 0
        %823 = vmatpush1.bf16.msra.mxu0 0
        %824 = vmatprep.subr.bf16.mxu0 0
        %825 = vmatpush1.bf16.msra.mxu0 0
        %826 = vmatprep.subr.bf16.mxu0 0
        %827 = vmatpush1.bf16.msra.mxu0 0
        %828 = vmatprep.subr.bf16.mxu0 0
        %829 = vmatpush1.bf16.msra.mxu0 0
        %830 = vmatprep.subr.bf16.mxu0 0
        %831 = vmatpush1.bf16.msra.mxu0 0
        %832 = vmatprep.subr.bf16.mxu0 0
        %833 = vmatpush1.bf16.msra.mxu0 0
        %834 = vmatprep.mubr.bf16.mxu0 0
        %835 = vmatmul.mubr.bf16.gmra.mrb[0].mxu0 %v797
        %v836 = vpop.f32.mrb[0].mxu0
        %v837 = vadd.f32 0.0, %v836
        %v838 = vpop.f32.mrb[0].mxu0
        %v839 = vpop.f32.mrb[0].mxu0
        %v840 = vadd.f32 0.0, %v839
        %v841 = vpop.f32.mrb[0].mxu0
        %842 = vdwg.mxu0
        %v843 = vadd.f32 %v785, %v837
        %v844 = vadd.f32 %v786, %v840
        %v845 = vmax.f32 %v843, 0.0
        %v846 = vmax.f32 %v844, 0.0
        %s847 = smul.u32 %s255, 16
        %s848 = scalar_lea.vmem %s240, %s847
        %849 = vst [vmem:[%s848] sm:$0xff] %v845
        %850 = vst [vmem:[%s848 + $0x8] sm:$0xff] %v846
      $region37: #{basic_conv_apply.1} parent=31 // loop_footer
        %s257 = sadd.s32 %s255, 1
      $region38: #{basic_conv_apply.1} parent=31 // loop_footer_branch
        %254 = sbr.rel target = $region34
      $region39: #{basic_conv_apply.1} parent=31 // loop_exit
        _
      %s851 = smul.u32 16, %s21
      %p852 = scmp.lt.s32.totalorder %s19, 1
      %s853 = scalar_select %p852, %s19, 1
      %p854 = scmp.lt.s32.totalorder %s851, 15
      %s855 = scalar_select %p854, %s851, 15
      %p856 = scmp.lt.s32.totalorder %s20, 0
      %s857 = scalar_select %p856, %s20, 0
      %s858 = smul.addr %s855, 2
      %s859 = sadd.s32 %s857, %s858
      %s860 = smul.addr %s853, 32
      %s861 = sadd.s32 %s859, %s860
      %s862 = smul.addr %s861, 8
      %s863 = scalar_lea.vmem %s3, %s862
      // Predicated region
      $region40: #{basic_conv_apply.1} parent=31 // pred_check
        %p864 = pneg %p133
      $region41: #{basic_conv_apply.1} parent=31 // pred_check_branch
        %866 = sbr.rel (%p864) target = $region43
      $region42: #{basic_conv_apply.1} parent=31 // pred_region
        %s867 = smul.u32 16, %s21
      $region43: #{basic_conv_apply.1} parent=31 // pred_fallthru
        _
    $region32: #{basic_conv_apply.1} parent=5 // pred_fallthru
      _
    %p868 = scmp.le.s32.totalorder 2, %s9
    // Predicated region
    $region44: #{basic_conv_apply.1} parent=5 // pred_check
      %p869 = pneg %p868
    $region45: #{basic_conv_apply.1} parent=5 // pred_check_branch
      %871 = sbr.rel (%p869) target = $region47
    $region46: #{basic_conv_apply.1} parent=5 // pred_region
      %s872 = ssub.s32 %s9, 2
      // Predicated region
      $region48: #{basic_conv_apply.1} parent=46 // pred_check
        %p873 = pneg %p139
      $region49: #{basic_conv_apply.1} parent=46 // pred_check_branch
        %875 = sbr.rel (%p873) target = $region51
      $region50: #{basic_conv_apply.1} parent=46 // pred_region
        %s876 = smul.u32 16, %s24
        %p877 = scmp.lt.s32.totalorder %s22, 1
        %s878 = scalar_select %p877, %s22, 1
        %p879 = scmp.lt.s32.totalorder %s876, 15
        %s880 = scalar_select %p879, %s876, 15
        %p881 = scmp.lt.s32.totalorder %s23, 0
        %s882 = scalar_select %p881, %s23, 0
        %s883 = smul.addr %s880, 2
        %s884 = sadd.s32 %s882, %s883
        %s885 = smul.addr %s878, 32
        %s886 = sadd.s32 %s884, %s885
        %s887 = smul.addr %s886, 8
        %s888 = scalar_lea.vmem %s3, %s887
      $region51: #{basic_conv_apply.1} parent=46 // pred_fallthru
        _
    $region47: #{basic_conv_apply.1} parent=5 // pred_fallthru
      _
  $region6: #{basic_conv_apply.1} parent=0 // loop_footer
    %s13 = sadd.s32 1, %s9
  $region7: #{basic_conv_apply.1} parent=0 // loop_footer_branch
    %8 = sbr.rel target = $region3
  $region8: #{basic_conv_apply.1} parent=0 // loop_exit
    _

</llo_original>
